<compile_context>
chip_gen: v6e
topology: v6e:2x2x1
jax: 0.10.0
libtpu: 0.0.40
codegen_flags: <defaults>
</compile_context>

<pallas_src>
import functools
import math

import jax
import jax.numpy as jnp
from jax.experimental import pallas as pl
from jax.experimental.pallas import tpu as pltpu

EPS = 1e-5
LANES = 128  # vreg lane width


# ---------------------------------------------------------------------------
# Kernels
# ---------------------------------------------------------------------------
def _rmsnorm_kernel(x_ref, w_ref, o_ref, *, inv_h: float):
    """Plain path: one logical row per block row (H on the lane axis)."""
    x32 = x_ref[...].astype(jnp.float32)                      # (tr, H)
    sum_sq = jnp.sum(x32 * x32, axis=-1, keepdims=True)       # (tr, 1), f32 reduce
    inv_rms = jax.lax.rsqrt(sum_sq * inv_h + EPS)              # (tr, 1)
    if jnp.dtype(o_ref.dtype) == jnp.float32:
        o_ref[...] = (x32 * inv_rms * w_ref[...].astype(jnp.float32)).astype(o_ref.dtype)
    else:
        # Keep the reduction in f32 but scale in the native dtype: halves the
        # (tr, H) f32 temporary footprint and VALU work (bf16 VPU on v6e/v7x).
        o_ref[...] = ((x_ref[...] * inv_rms.astype(x_ref.dtype)) * w_ref[...]).astype(o_ref.dtype)


def _rmsnorm_packed_kernel(x_ref, w_ref, seg_ref, segT_ref, o_ref, *, inv_h: float):
    """Lane-packed path: k = 128/H logical rows folded into the 128-lane axis.

    seg_ref : (k*H, k) block-diagonal ones — per-segment sum on the idle MXU.
    segT_ref: (k, k*H) its transpose     — broadcast per-segment scale back.
    Note: the MXU segment-sum may run at slightly reduced f32 precision on some
    generations (bf16-pass decomposition); worst-case deviation is ~0.3% rel.
    """
    x32 = x_ref[...].astype(jnp.float32)                       # (tr, k*H), lane-dense
    ss = jnp.dot(x32 * x32, seg_ref[...],
                 preferred_element_type=jnp.float32)            # (tr, k)
    inv_rms = jax.lax.rsqrt(ss * inv_h + EPS)                   # (tr, k)
    inv_full = jnp.dot(inv_rms, segT_ref[...],
                       preferred_element_type=jnp.float32)      # (tr, k*H)
    if jnp.dtype(o_ref.dtype) == jnp.float32:
        o_ref[...] = (x32 * inv_full * w_ref[...].astype(jnp.float32)).astype(o_ref.dtype)
    else:
        o_ref[...] = ((x_ref[...] * inv_full.astype(x_ref.dtype)) * w_ref[...]).astype(o_ref.dtype)


# ---------------------------------------------------------------------------
# Sizing helpers
# ---------------------------------------------------------------------------
def _vmem_limit_bytes() -> int:
    """Explicit scoped-VMEM limit: ~3/4 of physical, capped at 100 MiB.

    v7x (64 MiB physical)  -> ~48 MiB; v5e/v6e (128 MiB) -> ~96 MiB.
    """
    try:
        phys = int(pltpu.get_tpu_info().vmem_capacity_bytes)
    except Exception:
        phys = 64 << 20  # conservative fallback = v7x per-TensorCore VMEM
    return min((phys * 3) // 4, 100 << 20)


def _pick_row_tile(rows: int, h_eff: int, itemsize: int, budget_bytes: int) -> int:
    """Largest sublane-aligned row tile whose full footprint fits the budget."""
    # Sublane packing multiple: 8 (f32), 16 (bf16/f16), 32 (int8/fp8).
    sub = max(8, 32 // itemsize)
    # Per-row footprint: double-buffered in+out streams (4 * itemsize) plus the
    # in-kernel f32 temporaries of the upcast / x*x (~8 bytes per element).
    per_row = (4 * itemsize + 8) * h_eff
    max_tr = max(sub, (budget_bytes // per_row) // sub * sub)
    rows_sub = ((rows + sub - 1) // sub) * sub
    tr = min(max_tr, rows_sub)

    # For large inputs, keep >= ~8 grid steps so the ("parallel",) axis
    # load-balances across v7x's 2 TensorCores and the pipeline stays busy —
    # but never fragment below ~2 MiB of input per block (per-step overhead).
    min_tiles = 8
    min_block_rows = max(sub, (2 << 20) // (h_eff * itemsize))
    if rows_sub >= min_tiles * sub:
        cap = max(sub, (rows_sub // min_tiles) // sub * sub)
        if cap >= min_block_rows:
            tr = min(tr, cap)
    return max(sub, tr)


# ---------------------------------------------------------------------------
# Wrapper
# ---------------------------------------------------------------------------
def rmsnorm_pallas(x: jax.Array, weight: jax.Array) -> jax.Array:
    """RMSNorm over the last axis of x, scaled by weight (shape (H,))."""
    orig_shape = x.shape
    H = orig_shape[-1]
    rows = math.prod(orig_shape[:-1])
    if rows == 0:
        return x
    dtype = x.dtype
    itemsize = jnp.dtype(dtype).itemsize

    vmem_limit = _vmem_limit_bytes()
    tile_budget = vmem_limit - (4 << 20)  # headroom for weight block / seg mats / misc

    # Lane packing for narrow H: fold k rows into the 128-lane axis.
    k = LANES // H if (H < LANES and LANES % H == 0) else 1
    packed = (k > 1) and (rows % k == 0)

    if packed:
        rows_eff, h_eff = rows // k, k * H
        x2d = x.reshape(rows_eff, h_eff)          # pure view: row-major identical
        w2d = jnp.tile(weight.reshape(1, H), (1, k))
        seg_ids = jnp.arange(h_eff, dtype=jnp.int32) // H
        seg = (seg_ids[:, None] == jnp.arange(k, dtype=jnp.int32)[None, :]).astype(jnp.float32)
        segT = jnp.transpose(seg)
    else:
        rows_eff, h_eff = rows, H
        x2d = x.reshape(rows_eff, h_eff)
        w2d = weight.reshape(1, H)

    tr = _pick_row_tile(rows_eff, h_eff, itemsize, tile_budget)
    # Partial last block: no host-side pad/slice. Out-of-bounds rows of the last
    # block are masked on the output store; the reduction is row-wise, so
    # garbage rows never contaminate valid ones.
    num_tiles = pl.cdiv(rows_eff, tr)

    inv_h = 1.0 / float(H)
    compiler_params = pltpu.CompilerParams(
        dimension_semantics=("parallel",),
        vmem_limit_bytes=int(vmem_limit),
    )

    if packed:
        kernel = functools.partial(_rmsnorm_packed_kernel, inv_h=inv_h)
        in_specs = [
            pl.BlockSpec((tr, h_eff), lambda i: (i, 0)),
            pl.BlockSpec((1, h_eff), lambda i: (0, 0)),   # weight: VMEM-resident
            pl.BlockSpec((h_eff, k), lambda i: (0, 0)),   # seg:    VMEM-resident
            pl.BlockSpec((k, h_eff), lambda i: (0, 0)),   # segT:   VMEM-resident
        ]
        operands = (x2d, w2d, seg, segT)
    else:
        kernel = functools.partial(_rmsnorm_kernel, inv_h=inv_h)
        in_specs = [
            pl.BlockSpec((tr, h_eff), lambda i: (i, 0)),
            pl.BlockSpec((1, h_eff), lambda i: (0, 0)),   # weight: VMEM-resident
        ]
        operands = (x2d, w2d)

    out2d = pl.pallas_call(
        kernel,
        out_shape=jax.ShapeDtypeStruct((rows_eff, h_eff), dtype),
        grid_spec=pltpu.PrefetchScalarGridSpec(
            num_scalar_prefetch=0,
            grid=(num_tiles,),
            in_specs=in_specs,
            out_specs=pl.BlockSpec((tr, h_eff), lambda i: (i, 0)),
        ),
        compiler_params=compiler_params,
    )(*operands)

    return out2d.reshape(orig_shape)


# ---------------------------------------------------------------------------
# Reference + demo
# ---------------------------------------------------------------------------
def _reference(x, weight):
    x32 = x.astype(jnp.float32)
    mean_sq = jnp.mean(x32 * x32, axis=-1, keepdims=True)
    return (x32 * jax.lax.rsqrt(mean_sq + EPS) * weight.astype(jnp.float32)).astype(x.dtype)


# TODO(synk): backward pass (rmsnorm_backward_x / rmsnorm_backward_g) is not
# implemented here — only the module forward is translated.

if __name__ == "__main__":
    key = jax.random.PRNGKey(0)
    batch, seq, hidden = 2, 8, 32

    # Module init: weight = ones(hidden_size) — deterministic.
    x = jax.random.normal(key, (batch, seq, hidden), dtype=jnp.float32)
    weight = jnp.ones((hidden,), dtype=jnp.float32)

    out = jax.block_until_ready(rmsnorm_pallas(x, weight))
    ref = _reference(x, weight)
    assert out.shape == x.shape and out.dtype == x.dtype
    # Lane-packed (H=32) path uses the MXU for the segment sum, which may run
    # at slightly reduced f32 precision on some generations -> ~0.3% bound.
    assert jnp.allclose(out, ref, atol=1e-2, rtol=1e-2)

    # Ragged row count (not a multiple of the pack factor / sublane tile):
    # plain path + partial last block, no host-side pad or slice.
    x_tail = jax.random.normal(jax.random.PRNGKey(0), (3, 5, hidden), dtype=jnp.float32)
    out_tail = jax.block_until_ready(rmsnorm_pallas(x_tail, weight))
    assert jnp.allclose(out_tail, _reference(x_tail, weight), atol=1e-5, rtol=1e-5)

    # Lane-dense H (multiple of 128): plain path, exact VPU reduction.
    x_wide = jax.random.normal(jax.random.PRNGKey(0), (4, 40, 256), dtype=jnp.float32)
    w_wide = jnp.ones((256,), dtype=jnp.float32)
    out_wide = jax.block_until_ready(rmsnorm_pallas(x_wide, w_wide))
    assert jnp.allclose(out_wide, _reference(x_wide, w_wide), atol=1e-5, rtol=1e-5)

    # bf16 path: f32 reduction, native-dtype final scale.
    x_bf = jax.random.normal(jax.random.PRNGKey(0), (batch, seq, hidden), dtype=jnp.bfloat16)
    w_bf = jnp.ones((hidden,), dtype=jnp.bfloat16)
    out_bf = jax.block_until_ready(rmsnorm_pallas(x_bf, w_bf))
    ref_bf = _reference(x_bf, w_bf)
    assert jnp.allclose(out_bf.astype(jnp.float32), ref_bf.astype(jnp.float32),
                        atol=5e-2, rtol=5e-2)

    print("KERNEL_OK")
</pallas_src>

<mosaic_0001>
module attributes {stable_mosaic.version = 11 : i64} {
  func.func @_rmsnorm_packed_kernel(%arg0: i32, %arg1: memref<8x128xf32, #tpu.memory_space<vmem>>, %arg2: memref<1x128xf32, #tpu.memory_space<vmem>>, %arg3: memref<128x4xf32, #tpu.memory_space<vmem>>, %arg4: memref<4x128xf32, #tpu.memory_space<vmem>>, %arg5: memref<8x128xf32, #tpu.memory_space<vmem>>) attributes {dimension_semantics = [#tpu.dimension_semantics<parallel>], iteration_bounds = array<i64: 1>, scalar_prefetch = 0 : i64, scratch_operands = 0 : i64, tpu.core_type = #tpu.core_type<tc>, window_params = [{transform_indices = @transform_0, window_bounds = array<i64: 8, 128>}, {pipeline_mode = #tpu.pipeline_mode<synchronous>, transform_indices = @transform_1, window_bounds = array<i64: 1, 128>}, {pipeline_mode = #tpu.pipeline_mode<synchronous>, transform_indices = @transform_2, window_bounds = array<i64: 128, 4>}, {pipeline_mode = #tpu.pipeline_mode<synchronous>, transform_indices = @transform_3, window_bounds = array<i64: 4, 128>}, {transform_indices = @transform_4, window_bounds = array<i64: 8, 128>}]} {
    %c0 = arith.constant 0 : index
    %c0_0 = arith.constant 0 : index
    %0 = vector.load %arg1[%c0, %c0_0] : memref<8x128xf32, #tpu.memory_space<vmem>>, vector<8x128xf32>
    %1 = arith.mulf %0, %0 : vector<8x128xf32>
    %c0_1 = arith.constant 0 : index
    %c0_2 = arith.constant 0 : index
    %2 = vector.load %arg3[%c0_1, %c0_2] : memref<128x4xf32, #tpu.memory_space<vmem>>, vector<128x4xf32>
    %cst = arith.constant dense<0.000000e+00> : vector<8x4xf32>
    %3 = tpu.matmul %1, %2, %cst {dimension_numbers = #tpu.dot_dimension_numbers<[1], [0], [0], [1], [0, 0, 1, 1], [], []>} : vector<8x128xf32>, vector<128x4xf32>, vector<8x4xf32> -> vector<8x4xf32>
    %cst_3 = arith.constant 3.125000e-02 : f32
    %4 = vector.broadcast %cst_3 : f32 to vector<8x4xf32>
    %5 = arith.mulf %3, %4 : vector<8x4xf32>
    %cst_4 = arith.constant 9.99999974E-6 : f32
    %6 = vector.broadcast %cst_4 : f32 to vector<8x4xf32>
    %7 = arith.addf %5, %6 : vector<8x4xf32>
    %8 = math.rsqrt %7 : vector<8x4xf32>
    %c0_5 = arith.constant 0 : index
    %c0_6 = arith.constant 0 : index
    %9 = vector.load %arg4[%c0_5, %c0_6] : memref<4x128xf32, #tpu.memory_space<vmem>>, vector<4x128xf32>
    %cst_7 = arith.constant dense<0.000000e+00> : vector<8x128xf32>
    %10 = tpu.matmul %8, %9, %cst_7 {dimension_numbers = #tpu.dot_dimension_numbers<[1], [0], [0], [1], [0, 0, 1, 1], [], []>} : vector<8x4xf32>, vector<4x128xf32>, vector<8x128xf32> -> vector<8x128xf32>
    %11 = arith.mulf %0, %10 : vector<8x128xf32>
    %c0_8 = arith.constant 0 : index
    %c0_9 = arith.constant 0 : index
    %12 = vector.load %arg2[%c0_8, %c0_9] : memref<1x128xf32, #tpu.memory_space<vmem>>, vector<1x128xf32>
    %13 = vector.broadcast %12 : vector<1x128xf32> to vector<8x128xf32>
    %14 = arith.mulf %11, %13 : vector<8x128xf32>
    %c0_10 = arith.constant 0 : index
    %c0_11 = arith.constant 0 : index
    %15 = vector.load %arg5[%c0_10, %c0_11] : memref<8x128xf32, #tpu.memory_space<vmem>>, vector<8x128xf32>
    tpu.vector_store %arg5[%c0_10, %c0_11], %14 {strides = array<i32>} : memref<8x128xf32, #tpu.memory_space<vmem>>, vector<8x128xf32>,
    return
  }
  func.func @transform_0(%arg0: i32) -> (i32, i32) {
    %c0_i32 = arith.constant 0 : i32
    %c0_i32_0 = arith.constant 0 : i32
    return %arg0, %c0_i32 : i32, i32
  }
  func.func @transform_1(%arg0: i32) -> (i32, i32) {
    %c0_i32 = arith.constant 0 : i32
    %c0_i32_0 = arith.constant 0 : i32
    %c0_i32_1 = arith.constant 0 : i32
    return %c0_i32, %c0_i32_0 : i32, i32
  }
  func.func @transform_2(%arg0: i32) -> (i32, i32) {
    %c0_i32 = arith.constant 0 : i32
    %c0_i32_0 = arith.constant 0 : i32
    %c0_i32_1 = arith.constant 0 : i32
    return %c0_i32, %c0_i32_0 : i32, i32
  }
  func.func @transform_3(%arg0: i32) -> (i32, i32) {
    %c0_i32 = arith.constant 0 : i32
    %c0_i32_0 = arith.constant 0 : i32
    %c0_i32_1 = arith.constant 0 : i32
    return %c0_i32, %c0_i32_0 : i32, i32
  }
  func.func @transform_4(%arg0: i32) -> (i32, i32) {
    %c0_i32 = arith.constant 0 : i32
    %c0_i32_0 = arith.constant 0 : i32
    return %arg0, %c0_i32 : i32, i32
  }
}

</mosaic_0001>

<llo_original>
// kernel: tpu_custom_call.1
$region0: #{tpu_custom_call.1}
  #allocation0 [shape = 'u32[]', space=smem, size = 0x4, offset = 0x4, fixed_abs, tag = 'smem constant byte address 0x4 - core index']
  #allocation1 [shape = 'u32[144,128]{1,0:T(1,128)}', space=vmem, size = 0x12000, scoped, tag = 'internal scratch']
  %s0 = inlined_call_operand.vmem [shape: f32[4,128], index: 0, kind: input, shape index: {}]
  %s1 = inlined_call_operand.vmem [shape: f32[1,128], index: 1, kind: input, shape index: {}]
  %s2 = inlined_call_operand.vmem [shape: f32[128,4], index: 2, kind: input, shape index: {}]
  %s3 = inlined_call_operand.vmem [shape: f32[4,128], index: 3, kind: input, shape index: {}]
  %s4 = inlined_call_operand.hbm [shape: f32[4,128], index: 4, kind: output, shape index: {}]
  %s5 = sld [smem:[#allocation0]]
  $region26: #{tpu_custom_call.1} parent=0
    _
  %s7 = ssub.s32 1, %s5
  %s8 = scalar_select 0, %s7, %s5
  $region1: #{tpu_custom_call.1} parent=0
    #allocation2 [shape = 'u8[4096]{0}', space=vmem, size = 0x1000, scoped, tag = 'output window, operand 0, single buffered']
    #allocation3 [shape = 's32[1]{0}', space=sflag, size = 0x4, scoped, tag = 'scoped memory for tpu_custom_call.1']
    %9 = vsyncpa [#allocation3], 0
    // Predicated region
    $region2: #{tpu_custom_call.1} parent=1 // pred_check
      _
    $region3: #{tpu_custom_call.1} parent=1 // pred_check_branch
      %11 = sbr.rel (0) target = $region5
    $region4: #{tpu_custom_call.1} parent=1 // pred_region
      _
    $region5: #{tpu_custom_call.1} parent=1 // pred_fallthru
      _
    // Predicated region
    $region6: #{tpu_custom_call.1} parent=1 // pred_check
      _
    $region7: #{tpu_custom_call.1} parent=1 // pred_check_branch
      %13 = sbr.rel (0) target = $region9
    $region8: #{tpu_custom_call.1} parent=1 // pred_region
      _
    $region9: #{tpu_custom_call.1} parent=1 // pred_fallthru
      _
    // Predicated region
    $region10: #{tpu_custom_call.1} parent=1 // pred_check
      _
    $region11: #{tpu_custom_call.1} parent=1 // pred_check_branch
      %15 = sbr.rel (0) target = $region13
    $region12: #{tpu_custom_call.1} parent=1 // pred_region
      _
    $region13: #{tpu_custom_call.1} parent=1 // pred_fallthru
      _
    // Predicated region
    $region14: #{tpu_custom_call.1} parent=1 // pred_check
      _
    $region15: #{tpu_custom_call.1} parent=1 // pred_check_branch
      %17 = sbr.rel (0) target = $region17
    $region16: #{tpu_custom_call.1} parent=1 // pred_region
      _
    $region17: #{tpu_custom_call.1} parent=1 // pred_fallthru
      _
    %v18 = vld [vmem:[%s0] sm:$0xff]
    %v19 = vmul.f32 %v18, %v18
    %v20 = vld [vmem:[%s2] sm:$0xff]
    %v21 = vld [vmem:[%s2 + $0x8] sm:$0xff]
    %v22 = vld [vmem:[%s2 + $0x10] sm:$0xff]
    %v23 = vld [vmem:[%s2 + $0x18] sm:$0xff]
    %v24 = vld [vmem:[%s2 + $0x20] sm:$0xff]
    %v25 = vld [vmem:[%s2 + $0x28] sm:$0xff]
    %v26 = vld [vmem:[%s2 + $0x30] sm:$0xff]
    %v27 = vld [vmem:[%s2 + $0x38] sm:$0xff]
    %v28 = vld [vmem:[%s2 + $0x40] sm:$0xff]
    %v29 = vld [vmem:[%s2 + $0x48] sm:$0xff]
    %v30 = vld [vmem:[%s2 + $0x50] sm:$0xff]
    %v31 = vld [vmem:[%s2 + $0x58] sm:$0xff]
    %v32 = vld [vmem:[%s2 + $0x60] sm:$0xff]
    %v33 = vld [vmem:[%s2 + $0x68] sm:$0xff]
    %v34 = vld [vmem:[%s2 + $0x70] sm:$0xff]
    %v35 = vld [vmem:[%s2 + $0x78] sm:$0xff]
    %36 = vmatprep.subr.mxu0 0.0
    %37 = vmatpush1.msra.mxu0 %v35
    %38 = vmatprep.subr.mxu0 0.0
    %39 = vmatpush1.msra.mxu0 %v34
    %40 = vmatprep.subr.mxu0 0.0
    %41 = vmatpush1.msra.mxu0 %v33
    %42 = vmatprep.subr.mxu0 0.0
    %43 = vmatpush1.msra.mxu0 %v32
    %44 = vmatprep.subr.mxu0 0.0
    %45 = vmatpush1.msra.mxu0 %v31
    %46 = vmatprep.subr.mxu0 0.0
    %47 = vmatpush1.msra.mxu0 %v30
    %48 = vmatprep.subr.mxu0 0.0
    %49 = vmatpush1.msra.mxu0 %v29
    %50 = vmatprep.subr.mxu0 0.0
    %51 = vmatpush1.msra.mxu0 %v28
    %52 = vmatprep.subr.mxu0 0.0
    %53 = vmatpush1.msra.mxu0 %v27
    %54 = vmatprep.subr.mxu0 0.0
    %55 = vmatpush1.msra.mxu0 %v26
    %56 = vmatprep.subr.mxu0 0.0
    %57 = vmatpush1.msra.mxu0 %v25
    %58 = vmatprep.subr.mxu0 0.0
    %59 = vmatpush1.msra.mxu0 %v24
    %60 = vmatprep.subr.mxu0 0.0
    %61 = vmatpush1.msra.mxu0 %v23
    %62 = vmatprep.subr.mxu0 0.0
    %63 = vmatpush1.msra.mxu0 %v22
    %64 = vmatprep.subr.mxu0 0.0
    %65 = vmatpush1.msra.mxu0 %v21
    %66 = vmatprep.subr.mxu0 0.0
    %67 = vmatpush1.msra.mxu0 %v20
    %68 = vmatprep.subr.mxu0 0.0
    %69 = vmatpush2.msra.mxu0 0.0
    %70 = vmatprep.subr.mxu0 0.0
    %71 = vmatpush2.msra.mxu0 0.0
    %72 = vmatprep.subr.mxu0 0.0
    %73 = vmatpush2.msra.mxu0 0.0
    %74 = vmatprep.subr.mxu0 0.0
    %75 = vmatpush2.msra.mxu0 0.0
    %76 = vmatprep.subr.mxu0 0.0
    %77 = vmatpush2.msra.mxu0 0.0
    %78 = vmatprep.subr.mxu0 0.0
    %79 = vmatpush2.msra.mxu0 0.0
    %80 = vmatprep.subr.mxu0 0.0
    %81 = vmatpush2.msra.mxu0 0.0
    %82 = vmatprep.subr.mxu0 0.0
    %83 = vmatpush2.msra.mxu0 0.0
    %84 = vmatprep.subr.mxu0 0.0
    %85 = vmatpush2.msra.mxu0 0.0
    %86 = vmatprep.subr.mxu0 0.0
    %87 = vmatpush2.msra.mxu0 0.0
    %88 = vmatprep.subr.mxu0 0.0
    %89 = vmatpush2.msra.mxu0 0.0
    %90 = vmatprep.subr.mxu0 0.0
    %91 = vmatpush2.msra.mxu0 0.0
    %92 = vmatprep.subr.mxu0 0.0
    %93 = vmatpush2.msra.mxu0 0.0
    %94 = vmatprep.subr.mxu0 0.0
    %95 = vmatpush2.msra.mxu0 0.0
    %96 = vmatprep.subr.mxu0 0.0
    %97 = vmatpush2.msra.mxu0 0.0
    %98 = vmatprep.subr.mxu0 0.0
    %99 = vmatpush2.msra.mxu0 0.0
    %100 = vmatprep.mubr.f32.mxu0 0.0
    %101 = vmatmul.mubr.f32.gmra.mxu0 %v19
    %v102 = vpop.f32.mrf.mxu0
    %v103 = vadd.f32 0.0, %v102
    %v104 = vpop.f32.mrf.mxu0
    %105 = vdwg.mxu0
    %v106 = vmul.f32 %v103, 0.03125
    %v107 = vadd.f32 %v106, 1e-05
    %v108 = vrsqrt.pop %v107
    %v109 = vld [vmem:[%s3] sm:$0xf]
    %vm110 = vcmask 31744
    %v112 = vsel %vm110, %v108, 0
    %vm114 = vcmask 1043456
    %v116 = vsel %vm114, %v109, 0
    %118 = vmatprep.subr.mxu0 0.0
    %119 = vmatpush1.msra.mxu0 0.0
    %120 = vmatprep.subr.mxu0 0.0
    %121 = vmatpush1.msra.mxu0 0.0
    %122 = vmatprep.subr.mxu0 0.0
    %123 = vmatpush1.msra.mxu0 0.0
    %124 = vmatprep.subr.mxu0 0.0
    %125 = vmatpush1.msra.mxu0 0.0
    %126 = vmatprep.subr.mxu0 0.0
    %127 = vmatpush1.msra.mxu0 0.0
    %128 = vmatprep.subr.mxu0 0.0
    %129 = vmatpush1.msra.mxu0 0.0
    %130 = vmatprep.subr.mxu0 0.0
    %131 = vmatpush1.msra.mxu0 0.0
    %132 = vmatprep.subr.mxu0 0.0
    %133 = vmatpush1.msra.mxu0 0.0
    %134 = vmatprep.subr.mxu0 0.0
    %135 = vmatpush1.msra.mxu0 0.0
    %136 = vmatprep.subr.mxu0 0.0
    %137 = vmatpush1.msra.mxu0 0.0
    %138 = vmatprep.subr.mxu0 0.0
    %139 = vmatpush1.msra.mxu0 0.0
    %140 = vmatprep.subr.mxu0 0.0
    %141 = vmatpush1.msra.mxu0 0.0
    %142 = vmatprep.subr.mxu0 0.0
    %143 = vmatpush1.msra.mxu0 0.0
    %144 = vmatprep.subr.mxu0 0.0
    %145 = vmatpush1.msra.mxu0 0.0
    %146 = vmatprep.subr.mxu0 0.0
    %147 = vmatpush1.msra.mxu0 0.0
    %148 = vmatprep.subr.mxu0 0.0
    %149 = vmatpush1.msra.mxu0 %v116
    %150 = vmatprep.subr.mxu0 0.0
    %151 = vmatpush2.msra.mxu0 0.0
    %152 = vmatprep.subr.mxu0 0.0
    %153 = vmatpush2.msra.mxu0 0.0
    %154 = vmatprep.subr.mxu0 0.0
    %155 = vmatpush2.msra.mxu0 0.0
    %156 = vmatprep.subr.mxu0 0.0
    %157 = vmatpush2.msra.mxu0 0.0
    %158 = vmatprep.subr.mxu0 0.0
    %159 = vmatpush2.msra.mxu0 0.0
    %160 = vmatprep.subr.mxu0 0.0
    %161 = vmatpush2.msra.mxu0 0.0
    %162 = vmatprep.subr.mxu0 0.0
    %163 = vmatpush2.msra.mxu0 0.0
    %164 = vmatprep.subr.mxu0 0.0
    %165 = vmatpush2.msra.mxu0 0.0
    %166 = vmatprep.subr.mxu0 0.0
    %167 = vmatpush2.msra.mxu0 0.0
    %168 = vmatprep.subr.mxu0 0.0
    %169 = vmatpush2.msra.mxu0 0.0
    %170 = vmatprep.subr.mxu0 0.0
    %171 = vmatpush2.msra.mxu0 0.0
    %172 = vmatprep.subr.mxu0 0.0
    %173 = vmatpush2.msra.mxu0 0.0
    %174 = vmatprep.subr.mxu0 0.0
    %175 = vmatpush2.msra.mxu0 0.0
    %176 = vmatprep.subr.mxu0 0.0
    %177 = vmatpush2.msra.mxu0 0.0
    %178 = vmatprep.subr.mxu0 0.0
    %179 = vmatpush2.msra.mxu0 0.0
    %180 = vmatprep.subr.mxu0 0.0
    %181 = vmatpush2.msra.mxu0 0.0
    %182 = vmatprep.mubr.f32.mxu0 0.0
    %183 = vmatmul.mubr.f32.gmra.mxu0 %v112
    %v184 = vpop.f32.mrf.mxu0
    %v185 = vadd.f32 0.0, %v184
    %v186 = vpop.f32.mrf.mxu0
    %187 = vdwg.mxu0
    %v188 = vmul.f32 %v18, %v185
    %v189 = vld [vmem:[%s1] sm:$0x1]
    %v191 = vlaneseq
    %v192 = vshrl.u32 %v191, 7
    %v193 = vsub.s32 0, %v192
    %v194 = vrot.slane %v189, %v193
    %v196 = vmul.f32 %v188, %v194
    %197 = vst [vmem:[#allocation2] sm:$0xff] %v196
    // Predicated region
    $region18: #{tpu_custom_call.1} parent=1 // pred_check
      _
    $region19: #{tpu_custom_call.1} parent=1 // pred_check_branch
      %199 = sbr.rel (0) target = $region21
    $region20: #{tpu_custom_call.1} parent=1 // pred_region
      %s201 = ssub.s32 128, 64
      %202 = vsyncadd [#allocation3], %s201
      %s203 = sshll.u32 [#allocation2], 4
      %s204 = int_to_ptr.vmem [resolvable:$true] %s203
      %209 = dma.vmem_to_hbm [thread:$0]  %s204, 64, %s4, [#allocation3], 64, 64, 4
    $region21: #{tpu_custom_call.1} parent=1 // pred_fallthru
      _
    // Predicated region
    $region22: #{tpu_custom_call.1} parent=1 // pred_check
      _
    $region23: #{tpu_custom_call.1} parent=1 // pred_check_branch
      %211 = sbr.rel (0) target = $region25
    $region24: #{tpu_custom_call.1} parent=1 // pred_region
      %212 = dma.done [#allocation3], 128
    $region25: #{tpu_custom_call.1} parent=1 // pred_fallthru
      _
    %213 = vsyncpa [#allocation3], 1

</llo_original>
